<compile_context>
chip_gen: v7x
topology: tpu7x:2x2x1
jax: 0.10.0
libtpu: 0.0.40
codegen_flags: <defaults>
</compile_context>

<pallas_src>
import math

import jax
import jax.numpy as jnp
from jax import lax
from jax.experimental import pallas as pl
from jax.experimental.pallas import tpu as pltpu

SLOPE = 0.2
SQRT2 = math.sqrt(2.0)


def _scaled_lrelu(x):
    return jnp.where(x >= 0, x, x * SLOPE) * SQRT2


# -----------------------------------------------------------------------------
# Kernel (one batch image per grid step, channels-major, lane dim = H*W)
# -----------------------------------------------------------------------------
def bottleneck_kernel(x_ref, wsk1_ref, bsk1_ref, w2_ref, b2_ref, w3_ref, b3_ref,
                      mask_ref, o_ref, sh_ref, col_ref):
    """
    x_ref   : (1, C, HW)            input block (one image), f32
    wsk1    : (Co+C2, C)            [skip ; conv1] fused 1x1 weights
    bsk1    : (Co+C2, 1)            fused biases
    w2      : (C2, 9*C2)            3x3 weights, rows = (ky, kx, ci) im2col order
    b2      : (C2, 1)
    w3      : (Co, C2), b3 (Co, 1)  1x1 conv3
    mask    : (2, HW) f32           row0: x>=1 valid, row1: x<=W-2 valid
    o_ref   : (1, Co, HW)           output block
    sh_ref  : (C2, HW + 2*(W+1))    flat zero-padded h1 scratch (per block)
    col_ref : (9*C2, HW)            im2col scratch (per block)
    """
    C2 = w2_ref.shape[0]
    Co = w3_ref.shape[0]
    HW = x_ref.shape[2]
    margin = (sh_ref.shape[1] - HW) // 2        # == W + 1
    W = margin - 1
    cdt = w2_ref.dtype                          # MXU operand dtype (f32 / bf16)

    # ---- fused skip + conv1: one (Co+C2, C) x (C, HW) contraction -----------
    x = x_ref[0].astype(cdt)                                        # (C, HW)
    t = jnp.dot(wsk1_ref[...], x, preferred_element_type=jnp.float32)
    t = t + bsk1_ref[...]                                           # (Co+C2, HW)
    sk = t[:Co]                                                     # (Co, HW)
    h1 = _scaled_lrelu(t[Co:])                                      # (C2, HW)

    # ---- flat zero-padded h1 (margins supply the y-direction halo) ----------
    zmargin = jnp.zeros((C2, margin), jnp.float32)
    sh_ref[:, 0:margin] = zmargin
    sh_ref[:, margin:margin + HW] = h1
    sh_ref[:, margin + HW:margin + HW + margin] = zmargin

    # ---- im2col: 9 lane-shifted copies -> (9*C2, HW), then ONE deep matmul --
    m_left = mask_ref[0:1, :]      # zero where x == 0      (invalid for dx=-1)
    m_right = mask_ref[1:2, :]     # zero where x == W - 1  (invalid for dx=+1)
    for ky in range(3):
        for kx in range(3):
            d = (ky - 1) * W + (kx - 1)
            piece = sh_ref[:, margin + d: margin + d + HW]          # (C2, HW)
            if kx == 0:
                piece = piece * m_left
            elif kx == 2:
                piece = piece * m_right
            j = ky * 3 + kx
            col_ref[j * C2:(j + 1) * C2, :] = piece

    h2 = jnp.dot(w2_ref[...], col_ref[...].astype(cdt),
                 preferred_element_type=jnp.float32) + b2_ref[...]
    h2 = _scaled_lrelu(h2)                                          # (C2, HW)

    # ---- conv3 + residual add + final activation ----------------------------
    h3 = jnp.dot(w3_ref[...], h2.astype(cdt),
                 preferred_element_type=jnp.float32) + b3_ref[...]
    o_ref[0] = _scaled_lrelu(h3 + sk).astype(o_ref.dtype)


# -----------------------------------------------------------------------------
# Parameters (EqualConv2d: weight * scale, zero bias) and kernel-layout packing
# -----------------------------------------------------------------------------
def make_params(key, cin, cout):
    c2 = cin // 2
    ks = jax.random.split(key, 4)

    def eqconv(k, co, ci, ksz):
        w = jax.random.normal(k, (co, ci, ksz, ksz), jnp.float32)   # torch.randn layout
        scale = 1.0 / math.sqrt(ci * ksz * ksz)
        return w * scale, jnp.zeros((co,), jnp.float32)             # bias_init_val = 0

    w1, b1 = eqconv(ks[0], c2, cin, 1)
    w2, b2 = eqconv(ks[1], c2, c2, 3)
    w3, b3 = eqconv(ks[2], cout, c2, 1)
    ws, bs = eqconv(ks[3], cout, cin, 1)
    return dict(w1=w1, b1=b1, w2=w2, b2=b2, w3=w3, b3=b3, ws=ws, bs=bs)


def pack_params(raw, compute_dtype=jnp.float32):
    """Fuse/flatten weights for the channels-major kernel."""
    c2 = raw["w1"].shape[0]
    cout = raw["w3"].shape[0]
    w1 = raw["w1"][:, :, 0, 0]                          # (c2, cin)
    ws = raw["ws"][:, :, 0, 0]                          # (cout, cin)
    w3 = raw["w3"][:, :, 0, 0]                          # (cout, c2)
    # OIHW -> (O, ky, kx, I) -> (O, 9*I): matches the kernel's im2col row order.
    w2 = jnp.transpose(raw["w2"], (0, 2, 3, 1)).reshape(c2, 9 * c2)
    return dict(
        wsk1=jnp.concatenate([ws, w1], axis=0).astype(compute_dtype),   # (cout+c2, cin)
        bsk1=jnp.concatenate([raw["bs"], raw["b1"]]).reshape(cout + c2, 1),
        w2m=w2.astype(compute_dtype),
        b2=raw["b2"].reshape(c2, 1),
        w3m=w3.astype(compute_dtype),
        b3=raw["b3"].reshape(cout, 1),
    )


# -----------------------------------------------------------------------------
# Wrapper: NCHW in / NCHW out, no transposes (only free reshapes)
# -----------------------------------------------------------------------------
def bottleneck_pallas(x_nchw, kp):
    N, C, H, W = x_nchw.shape
    HW = H * W
    C2 = kp["w2m"].shape[0]
    Co = kp["w3m"].shape[0]
    margin = W + 1

    x_flat = x_nchw.reshape(N, C, HW)                   # NCHW -> (N, C, HW), free

    xpos = jnp.arange(HW, dtype=jnp.int32) % W
    edge_mask = jnp.stack([(xpos >= 1), (xpos <= W - 2)]).astype(jnp.float32)  # (2, HW)

    # Per-tile VMEM budget (double-buffered blocks + weights + scratch + temps),
    # capped with headroom below v7x's 64 MiB physical VMEM.
    wbytes = sum(int(v.size) * jnp.dtype(v.dtype).itemsize for v in kp.values())
    need = (2 * (C + Co) * HW * 4
            + 2 * wbytes + int(edge_mask.size) * 4
            + (C2 * (HW + 2 * margin) + 9 * C2 * HW) * 4
            + (2 * (Co + C2) + 11 * C2) * HW * 4)
    vmem_limit = int(min(max(2 * need, 16 * 2 ** 20), 48 * 2 ** 20))

    flops = 2 * N * HW * ((Co + C2) * C + 9 * C2 * C2 + Co * C2)
    bytes_accessed = int(x_flat.size * 4 + N * Co * HW * 4 + wbytes
                         + int(edge_mask.size) * 4)

    out_flat = pl.pallas_call(
        bottleneck_kernel,
        out_shape=jax.ShapeDtypeStruct((N, Co, HW), jnp.float32),
        grid=(N,),
        in_specs=[
            pl.BlockSpec((1, C, HW), lambda n: (n, 0, 0)),          # x: one image/step
            pl.BlockSpec(kp["wsk1"].shape, lambda n: (0, 0)),       # weights: VMEM-resident
            pl.BlockSpec(kp["bsk1"].shape, lambda n: (0, 0)),
            pl.BlockSpec(kp["w2m"].shape, lambda n: (0, 0)),
            pl.BlockSpec(kp["b2"].shape, lambda n: (0, 0)),
            pl.BlockSpec(kp["w3m"].shape, lambda n: (0, 0)),
            pl.BlockSpec(kp["b3"].shape, lambda n: (0, 0)),
            pl.BlockSpec(edge_mask.shape, lambda n: (0, 0)),
        ],
        out_specs=pl.BlockSpec((1, Co, HW), lambda n: (n, 0, 0)),
        scratch_shapes=[
            pltpu.VMEM((C2, HW + 2 * margin), jnp.float32),         # flat padded h1
            pltpu.VMEM((9 * C2, HW), jnp.float32),                  # im2col matrix
        ],
        compiler_params=pltpu.CompilerParams(
            dimension_semantics=("parallel",),
            vmem_limit_bytes=vmem_limit,
        ),
        cost_estimate=pl.CostEstimate(flops=flops, transcendentals=0,
                                      bytes_accessed=bytes_accessed),
    )(x_flat, kp["wsk1"], kp["bsk1"], kp["w2m"], kp["b2"], kp["w3m"], kp["b3"],
      edge_mask)

    return out_flat.reshape(N, Co, H, W)                # (N, Co, HW) -> NCHW, free


# -----------------------------------------------------------------------------
# Pure-JAX reference of the PyTorch forward (for verification)
# -----------------------------------------------------------------------------
def bottleneck_ref(x, raw):
    def conv(h, w, b, pad):
        y = lax.conv_general_dilated(
            h, w, window_strides=(1, 1), padding=[(pad, pad), (pad, pad)],
            dimension_numbers=("NCHW", "OIHW", "NCHW"),
            precision=lax.Precision.HIGHEST)
        return y + b.reshape(1, -1, 1, 1)

    h = _scaled_lrelu(conv(x, raw["w1"], raw["b1"], 0))
    h = _scaled_lrelu(conv(h, raw["w2"], raw["b2"], 1))
    h = conv(h, raw["w3"], raw["b3"], 0)
    s = conv(x, raw["ws"], raw["bs"], 0)
    return _scaled_lrelu(h + s)


if __name__ == "__main__":
    key = jax.random.PRNGKey(0)
    k_x, k_p = jax.random.split(key)

    N, Cin, Cout, S = 2, 8, 8, 16
    x = jax.random.normal(k_x, (N, Cin, S, S), jnp.float32)   # NCHW, like PyTorch
    raw = make_params(k_p, Cin, Cout)
    ref = jax.block_until_ready(bottleneck_ref(x, raw))

    # f32 MXU-operand path: exact module semantics.
    out_f32 = jax.block_until_ready(bottleneck_pallas(x, pack_params(raw, jnp.float32)))
    assert out_f32.shape == (N, Cout, S, S), out_f32.shape
    err_f32 = float(jnp.max(jnp.abs(out_f32 - ref)))
    assert err_f32 < 1e-3, err_f32

    # bf16 MXU-operand path (v6e/v7x fast path): f32 accumulation + f32 epilogue.
    out_bf16 = jax.block_until_ready(bottleneck_pallas(x, pack_params(raw, jnp.bfloat16)))
    assert out_bf16.shape == (N, Cout, S, S), out_bf16.shape
    err_bf16 = float(jnp.max(jnp.abs(out_bf16 - ref)))
    assert err_bf16 < 0.5, err_bf16

    print("KERNEL_OK")
</pallas_src>

<mosaic_0001>
module attributes {stable_mosaic.version = 11 : i64} {
  func.func @bottleneck_kernel(%arg0: i32, %arg1: memref<1x8x256xf32, #tpu.memory_space<vmem>>, %arg2: memref<12x8xf32, #tpu.memory_space<vmem>>, %arg3: memref<12x1xf32, #tpu.memory_space<vmem>>, %arg4: memref<4x36xf32, #tpu.memory_space<vmem>>, %arg5: memref<4x1xf32, #tpu.memory_space<vmem>>, %arg6: memref<8x4xf32, #tpu.memory_space<vmem>>, %arg7: memref<8x1xf32, #tpu.memory_space<vmem>>, %arg8: memref<2x256xf32, #tpu.memory_space<vmem>>, %arg9: memref<1x8x256xf32, #tpu.memory_space<vmem>>, %arg10: memref<4x290xf32, #tpu.memory_space<vmem>>, %arg11: memref<36x256xf32, #tpu.memory_space<vmem>>) attributes {dimension_semantics = [#tpu.dimension_semantics<parallel>], iteration_bounds = array<i64: 2>, scalar_prefetch = 0 : i64, scratch_operands = 2 : i64, tpu.core_type = #tpu.core_type<tc>, window_params = [{transform_indices = @transform_0, window_bounds = array<i64: 1, 8, 256>}, {pipeline_mode = #tpu.pipeline_mode<synchronous>, transform_indices = @transform_1, window_bounds = array<i64: 12, 8>}, {pipeline_mode = #tpu.pipeline_mode<synchronous>, transform_indices = @transform_2, window_bounds = array<i64: 12, 1>}, {pipeline_mode = #tpu.pipeline_mode<synchronous>, transform_indices = @transform_3, window_bounds = array<i64: 4, 36>}, {pipeline_mode = #tpu.pipeline_mode<synchronous>, transform_indices = @transform_4, window_bounds = array<i64: 4, 1>}, {pipeline_mode = #tpu.pipeline_mode<synchronous>, transform_indices = @transform_5, window_bounds = array<i64: 8, 4>}, {pipeline_mode = #tpu.pipeline_mode<synchronous>, transform_indices = @transform_6, window_bounds = array<i64: 8, 1>}, {pipeline_mode = #tpu.pipeline_mode<synchronous>, transform_indices = @transform_7, window_bounds = array<i64: 2, 256>}, {transform_indices = @transform_8, window_bounds = array<i64: 1, 8, 256>}]} {
    %c0 = arith.constant 0 : index
    %c0_0 = arith.constant 0 : index
    %c0_1 = arith.constant 0 : index
    %0 = vector.load %arg1[%c0, %c0_0, %c0_1] : memref<1x8x256xf32, #tpu.memory_space<vmem>>, vector<1x8x256xf32>
    %1 = vector.shape_cast %0 : vector<1x8x256xf32> to vector<8x256xf32>
    %c0_2 = arith.constant 0 : index
    %c0_3 = arith.constant 0 : index
    %2 = vector.load %arg2[%c0_2, %c0_3] : memref<12x8xf32, #tpu.memory_space<vmem>>, vector<12x8xf32>
    %cst = arith.constant dense<0.000000e+00> : vector<12x256xf32>
    %3 = tpu.matmul %2, %1, %cst {dimension_numbers = #tpu.dot_dimension_numbers<[1], [0], [0], [1], [0, 0, 1, 1], [], []>} : vector<12x8xf32>, vector<8x256xf32>, vector<12x256xf32> -> vector<12x256xf32>
    %c0_4 = arith.constant 0 : index
    %c0_5 = arith.constant 0 : index
    %4 = vector.load %arg3[%c0_4, %c0_5] : memref<12x1xf32, #tpu.memory_space<vmem>>, vector<12x1xf32>
    %5 = vector.broadcast %4 : vector<12x1xf32> to vector<12x256xf32>
    %6 = arith.addf %3, %5 : vector<12x256xf32>
    %7 = vector.extract_strided_slice %6 {offsets = [0, 0], sizes = [8, 256], strides = [1, 1]} : vector<12x256xf32> to vector<8x256xf32>
    %8 = vector.extract_strided_slice %6 {offsets = [8, 0], sizes = [4, 256], strides = [1, 1]} : vector<12x256xf32> to vector<4x256xf32>
    %cst_6 = arith.constant 0.000000e+00 : f32
    %9 = vector.broadcast %cst_6 : f32 to vector<4x256xf32>
    %10 = arith.cmpf oge, %8, %9 : vector<4x256xf32>
    %cst_7 = arith.constant 2.000000e-01 : f32
    %11 = vector.broadcast %cst_7 : f32 to vector<4x256xf32>
    %12 = arith.mulf %8, %11 : vector<4x256xf32>
    %13 = arith.select %10, %8, %12 : vector<4x256xi1>, vector<4x256xf32>
    %cst_8 = arith.constant 1.41421354 : f32
    %14 = vector.broadcast %cst_8 : f32 to vector<4x256xf32>
    %15 = arith.mulf %13, %14 : vector<4x256xf32>
    %cst_9 = arith.constant 0.000000e+00 : f32
    %16 = vector.broadcast %cst_9 : f32 to vector<4x17xf32>
    %c0_10 = arith.constant 0 : index
    %c0_11 = arith.constant 0 : index
    %17 = vector.load %arg10[%c0_10, %c0_11] : memref<4x290xf32, #tpu.memory_space<vmem>>, vector<4x17xf32>
    tpu.vector_store %arg10[%c0_10, %c0_11], %16 {strides = array<i32>} : memref<4x290xf32, #tpu.memory_space<vmem>>, vector<4x17xf32>,
    %c0_12 = arith.constant 0 : index
    %c17 = arith.constant 17 : index
    %18 = vector.load %arg10[%c0_12, %c17] : memref<4x290xf32, #tpu.memory_space<vmem>>, vector<4x256xf32>
    tpu.vector_store %arg10[%c0_12, %c17], %15 {strides = array<i32>} : memref<4x290xf32, #tpu.memory_space<vmem>>, vector<4x256xf32>,
    %c0_13 = arith.constant 0 : index
    %c273 = arith.constant 273 : index
    %19 = vector.load %arg10[%c0_13, %c273] : memref<4x290xf32, #tpu.memory_space<vmem>>, vector<4x17xf32>
    tpu.vector_store %arg10[%c0_13, %c273], %16 {strides = array<i32>} : memref<4x290xf32, #tpu.memory_space<vmem>>, vector<4x17xf32>,
    %c0_14 = arith.constant 0 : index
    %c0_15 = arith.constant 0 : index
    %20 = vector.load %arg8[%c0_14, %c0_15] : memref<2x256xf32, #tpu.memory_space<vmem>>, vector<1x256xf32>
    %c1 = arith.constant 1 : index
    %c0_16 = arith.constant 0 : index
    %21 = vector.load %arg8[%c1, %c0_16] : memref<2x256xf32, #tpu.memory_space<vmem>>, vector<1x256xf32>
    %c0_17 = arith.constant 0 : index
    %c0_18 = arith.constant 0 : index
    %22 = vector.load %arg10[%c0_17, %c0_18] : memref<4x290xf32, #tpu.memory_space<vmem>>, vector<4x256xf32>
    %23 = vector.broadcast %20 : vector<1x256xf32> to vector<4x256xf32>
    %24 = arith.mulf %22, %23 : vector<4x256xf32>
    %c0_19 = arith.constant 0 : index
    %c0_20 = arith.constant 0 : index
    %25 = vector.load %arg11[%c0_19, %c0_20] : memref<36x256xf32, #tpu.memory_space<vmem>>, vector<4x256xf32>
    tpu.vector_store %arg11[%c0_19, %c0_20], %24 {strides = array<i32>} : memref<36x256xf32, #tpu.memory_space<vmem>>, vector<4x256xf32>,
    %c0_21 = arith.constant 0 : index
    %c1_22 = arith.constant 1 : index
    %26 = vector.load %arg10[%c0_21, %c1_22] : memref<4x290xf32, #tpu.memory_space<vmem>>, vector<4x256xf32>
    %c4 = arith.constant 4 : index
    %c0_23 = arith.constant 0 : index
    %27 = vector.load %arg11[%c4, %c0_23] : memref<36x256xf32, #tpu.memory_space<vmem>>, vector<4x256xf32>
    tpu.vector_store %arg11[%c4, %c0_23], %26 {strides = array<i32>} : memref<36x256xf32, #tpu.memory_space<vmem>>, vector<4x256xf32>,
    %c0_24 = arith.constant 0 : index
    %c2 = arith.constant 2 : index
    %28 = vector.load %arg10[%c0_24, %c2] : memref<4x290xf32, #tpu.memory_space<vmem>>, vector<4x256xf32>
    %29 = vector.broadcast %21 : vector<1x256xf32> to vector<4x256xf32>
    %30 = arith.mulf %28, %29 : vector<4x256xf32>
    %c8 = arith.constant 8 : index
    %c0_25 = arith.constant 0 : index
    %31 = vector.load %arg11[%c8, %c0_25] : memref<36x256xf32, #tpu.memory_space<vmem>>, vector<4x256xf32>
    tpu.vector_store %arg11[%c8, %c0_25], %30 {strides = array<i32>} : memref<36x256xf32, #tpu.memory_space<vmem>>, vector<4x256xf32>,
    %c0_26 = arith.constant 0 : index
    %c16 = arith.constant 16 : index
    %32 = vector.load %arg10[%c0_26, %c16] : memref<4x290xf32, #tpu.memory_space<vmem>>, vector<4x256xf32>
    %33 = vector.broadcast %20 : vector<1x256xf32> to vector<4x256xf32>
    %34 = arith.mulf %32, %33 : vector<4x256xf32>
    %c12 = arith.constant 12 : index
    %c0_27 = arith.constant 0 : index
    %35 = vector.load %arg11[%c12, %c0_27] : memref<36x256xf32, #tpu.memory_space<vmem>>, vector<4x256xf32>
    tpu.vector_store %arg11[%c12, %c0_27], %34 {strides = array<i32>} : memref<36x256xf32, #tpu.memory_space<vmem>>, vector<4x256xf32>,
    %c0_28 = arith.constant 0 : index
    %c17_29 = arith.constant 17 : index
    %36 = vector.load %arg10[%c0_28, %c17_29] : memref<4x290xf32, #tpu.memory_space<vmem>>, vector<4x256xf32>
    %c16_30 = arith.constant 16 : index
    %c0_31 = arith.constant 0 : index
    %37 = vector.load %arg11[%c16_30, %c0_31] : memref<36x256xf32, #tpu.memory_space<vmem>>, vector<4x256xf32>
    tpu.vector_store %arg11[%c16_30, %c0_31], %36 {strides = array<i32>} : memref<36x256xf32, #tpu.memory_space<vmem>>, vector<4x256xf32>,
    %c0_32 = arith.constant 0 : index
    %c18 = arith.constant 18 : index
    %38 = vector.load %arg10[%c0_32, %c18] : memref<4x290xf32, #tpu.memory_space<vmem>>, vector<4x256xf32>
    %39 = vector.broadcast %21 : vector<1x256xf32> to vector<4x256xf32>
    %40 = arith.mulf %38, %39 : vector<4x256xf32>
    %c20 = arith.constant 20 : index
    %c0_33 = arith.constant 0 : index
    %41 = vector.load %arg11[%c20, %c0_33] : memref<36x256xf32, #tpu.memory_space<vmem>>, vector<4x256xf32>
    tpu.vector_store %arg11[%c20, %c0_33], %40 {strides = array<i32>} : memref<36x256xf32, #tpu.memory_space<vmem>>, vector<4x256xf32>,
    %c0_34 = arith.constant 0 : index
    %c32 = arith.constant 32 : index
    %42 = vector.load %arg10[%c0_34, %c32] : memref<4x290xf32, #tpu.memory_space<vmem>>, vector<4x256xf32>
    %43 = vector.broadcast %20 : vector<1x256xf32> to vector<4x256xf32>
    %44 = arith.mulf %42, %43 : vector<4x256xf32>
    %c24 = arith.constant 24 : index
    %c0_35 = arith.constant 0 : index
    %45 = vector.load %arg11[%c24, %c0_35] : memref<36x256xf32, #tpu.memory_space<vmem>>, vector<4x256xf32>
    tpu.vector_store %arg11[%c24, %c0_35], %44 {strides = array<i32>} : memref<36x256xf32, #tpu.memory_space<vmem>>, vector<4x256xf32>,
    %c0_36 = arith.constant 0 : index
    %c33 = arith.constant 33 : index
    %46 = vector.load %arg10[%c0_36, %c33] : memref<4x290xf32, #tpu.memory_space<vmem>>, vector<4x256xf32>
    %c28 = arith.constant 28 : index
    %c0_37 = arith.constant 0 : index
    %47 = vector.load %arg11[%c28, %c0_37] : memref<36x256xf32, #tpu.memory_space<vmem>>, vector<4x256xf32>
    tpu.vector_store %arg11[%c28, %c0_37], %46 {strides = array<i32>} : memref<36x256xf32, #tpu.memory_space<vmem>>, vector<4x256xf32>,
    %c0_38 = arith.constant 0 : index
    %c34 = arith.constant 34 : index
    %48 = vector.load %arg10[%c0_38, %c34] : memref<4x290xf32, #tpu.memory_space<vmem>>, vector<4x256xf32>
    %49 = vector.broadcast %21 : vector<1x256xf32> to vector<4x256xf32>
    %50 = arith.mulf %48, %49 : vector<4x256xf32>
    %c32_39 = arith.constant 32 : index
    %c0_40 = arith.constant 0 : index
    %51 = vector.load %arg11[%c32_39, %c0_40] : memref<36x256xf32, #tpu.memory_space<vmem>>, vector<4x256xf32>
    tpu.vector_store %arg11[%c32_39, %c0_40], %50 {strides = array<i32>} : memref<36x256xf32, #tpu.memory_space<vmem>>, vector<4x256xf32>,
    %c0_41 = arith.constant 0 : index
    %c0_42 = arith.constant 0 : index
    %52 = vector.load %arg4[%c0_41, %c0_42] : memref<4x36xf32, #tpu.memory_space<vmem>>, vector<4x36xf32>
    %c0_43 = arith.constant 0 : index
    %c0_44 = arith.constant 0 : index
    %53 = vector.load %arg11[%c0_43, %c0_44] : memref<36x256xf32, #tpu.memory_space<vmem>>, vector<36x256xf32>
    %cst_45 = arith.constant dense<0.000000e+00> : vector<4x256xf32>
    %54 = tpu.matmul %52, %53, %cst_45 {dimension_numbers = #tpu.dot_dimension_numbers<[1], [0], [0], [1], [0, 0, 1, 1], [], []>} : vector<4x36xf32>, vector<36x256xf32>, vector<4x256xf32> -> vector<4x256xf32>
    %c0_46 = arith.constant 0 : index
    %c0_47 = arith.constant 0 : index
    %55 = vector.load %arg5[%c0_46, %c0_47] : memref<4x1xf32, #tpu.memory_space<vmem>>, vector<4x1xf32>
    %56 = vector.broadcast %55 : vector<4x1xf32> to vector<4x256xf32>
    %57 = arith.addf %54, %56 : vector<4x256xf32>
    %cst_48 = arith.constant 0.000000e+00 : f32
    %58 = vector.broadcast %cst_48 : f32 to vector<4x256xf32>
    %59 = arith.cmpf oge, %57, %58 : vector<4x256xf32>
    %cst_49 = arith.constant 2.000000e-01 : f32
    %60 = vector.broadcast %cst_49 : f32 to vector<4x256xf32>
    %61 = arith.mulf %57, %60 : vector<4x256xf32>
    %62 = arith.select %59, %57, %61 : vector<4x256xi1>, vector<4x256xf32>
    %cst_50 = arith.constant 1.41421354 : f32
    %63 = vector.broadcast %cst_50 : f32 to vector<4x256xf32>
    %64 = arith.mulf %62, %63 : vector<4x256xf32>
    %c0_51 = arith.constant 0 : index
    %c0_52 = arith.constant 0 : index
    %65 = vector.load %arg6[%c0_51, %c0_52] : memref<8x4xf32, #tpu.memory_space<vmem>>, vector<8x4xf32>
    %cst_53 = arith.constant dense<0.000000e+00> : vector<8x256xf32>
    %66 = tpu.matmul %65, %64, %cst_53 {dimension_numbers = #tpu.dot_dimension_numbers<[1], [0], [0], [1], [0, 0, 1, 1], [], []>} : vector<8x4xf32>, vector<4x256xf32>, vector<8x256xf32> -> vector<8x256xf32>
    %c0_54 = arith.constant 0 : index
    %c0_55 = arith.constant 0 : index
    %67 = vector.load %arg7[%c0_54, %c0_55] : memref<8x1xf32, #tpu.memory_space<vmem>>, vector<8x1xf32>
    %68 = vector.broadcast %67 : vector<8x1xf32> to vector<8x256xf32>
    %69 = arith.addf %66, %68 : vector<8x256xf32>
    %70 = arith.addf %69, %7 : vector<8x256xf32>
    %cst_56 = arith.constant 0.000000e+00 : f32
    %71 = vector.broadcast %cst_56 : f32 to vector<8x256xf32>
    %72 = arith.cmpf oge, %70, %71 : vector<8x256xf32>
    %cst_57 = arith.constant 2.000000e-01 : f32
    %73 = vector.broadcast %cst_57 : f32 to vector<8x256xf32>
    %74 = arith.mulf %70, %73 : vector<8x256xf32>
    %75 = arith.select %72, %70, %74 : vector<8x256xi1>, vector<8x256xf32>
    %cst_58 = arith.constant 1.41421354 : f32
    %76 = vector.broadcast %cst_58 : f32 to vector<8x256xf32>
    %77 = arith.mulf %75, %76 : vector<8x256xf32>
    %c0_59 = arith.constant 0 : index
    %c0_60 = arith.constant 0 : index
    %c0_61 = arith.constant 0 : index
    %78 = vector.load %arg9[%c0_59, %c0_60, %c0_61] : memref<1x8x256xf32, #tpu.memory_space<vmem>>, vector<1x8x256xf32>
    %79 = vector.shape_cast %78 : vector<1x8x256xf32> to vector<8x256xf32>
    %80 = vector.shape_cast %77 : vector<8x256xf32> to vector<1x8x256xf32>
    tpu.vector_store %arg9[%c0_59, %c0_60, %c0_61], %80 {strides = array<i32>} : memref<1x8x256xf32, #tpu.memory_space<vmem>>, vector<1x8x256xf32>,
    return
  }
  func.func @transform_0(%arg0: i32) -> (i32, i32, i32) {
    %c0_i32 = arith.constant 0 : i32
    %c0_i32_0 = arith.constant 0 : i32
    %c0_i32_1 = arith.constant 0 : i32
    return %arg0, %c0_i32, %c0_i32_0 : i32, i32, i32
  }
  func.func @transform_1(%arg0: i32) -> (i32, i32) {
    %c0_i32 = arith.constant 0 : i32
    %c0_i32_0 = arith.constant 0 : i32
    %c0_i32_1 = arith.constant 0 : i32
    return %c0_i32, %c0_i32_0 : i32, i32
  }
  func.func @transform_2(%arg0: i32) -> (i32, i32) {
    %c0_i32 = arith.constant 0 : i32
    %c0_i32_0 = arith.constant 0 : i32
    %c0_i32_1 = arith.constant 0 : i32
    return %c0_i32, %c0_i32_0 : i32, i32
  }
  func.func @transform_3(%arg0: i32) -> (i32, i32) {
    %c0_i32 = arith.constant 0 : i32
    %c0_i32_0 = arith.constant 0 : i32
    %c0_i32_1 = arith.constant 0 : i32
    return %c0_i32, %c0_i32_0 : i32, i32
  }
  func.func @transform_4(%arg0: i32) -> (i32, i32) {
    %c0_i32 = arith.constant 0 : i32
    %c0_i32_0 = arith.constant 0 : i32
    %c0_i32_1 = arith.constant 0 : i32
    return %c0_i32, %c0_i32_0 : i32, i32
  }
  func.func @transform_5(%arg0: i32) -> (i32, i32) {
    %c0_i32 = arith.constant 0 : i32
    %c0_i32_0 = arith.constant 0 : i32
    %c0_i32_1 = arith.constant 0 : i32
    return %c0_i32, %c0_i32_0 : i32, i32
  }
  func.func @transform_6(%arg0: i32) -> (i32, i32) {
    %c0_i32 = arith.constant 0 : i32
    %c0_i32_0 = arith.constant 0 : i32
    %c0_i32_1 = arith.constant 0 : i32
    return %c0_i32, %c0_i32_0 : i32, i32
  }
  func.func @transform_7(%arg0: i32) -> (i32, i32) {
    %c0_i32 = arith.constant 0 : i32
    %c0_i32_0 = arith.constant 0 : i32
    %c0_i32_1 = arith.constant 0 : i32
    return %c0_i32, %c0_i32_0 : i32, i32
  }
  func.func @transform_8(%arg0: i32) -> (i32, i32, i32) {
    %c0_i32 = arith.constant 0 : i32
    %c0_i32_0 = arith.constant 0 : i32
    %c0_i32_1 = arith.constant 0 : i32
    return %arg0, %c0_i32, %c0_i32_0 : i32, i32, i32
  }
}

</mosaic_0001>

<llo_original>
// kernel: tpu_custom_call.1
$region0: #{tpu_custom_call.1}
  #allocation0 [shape = 'u32[]', space=smem, size = 0x4, offset = 0x4, fixed_abs, tag = 'smem constant byte address 0x4 - core index']
  #allocation1 [shape = 'u32[144,128]{1,0:T(1,128)}', space=vmem, size = 0x12000, scoped, tag = 'internal scratch']
  #allocation2 [shape = 'f32[4,290]{1,0:T(4,128)}', space=vmem, size = 0x1800, scoped, tag = 'scratch operand']
  #allocation3 [shape = 'f32[36,256]{1,0:T(8,128)}', space=vmem, size = 0xa000, scoped, tag = 'scratch operand']
  %s0 = inlined_call_operand.vmem [shape: f32[2,8,256], index: 0, kind: input, shape index: {}]
  %s1 = inlined_call_operand.vmem [shape: f32[12,8], index: 1, kind: input, shape index: {}]
  %s2 = inlined_call_operand.vmem [shape: f32[12,1], index: 2, kind: input, shape index: {}]
  %s3 = inlined_call_operand.vmem [shape: f32[4,36], index: 3, kind: input, shape index: {}]
  %s4 = inlined_call_operand.vmem [shape: f32[4,1], index: 4, kind: input, shape index: {}]
  %s5 = inlined_call_operand.vmem [shape: f32[8,4], index: 5, kind: input, shape index: {}]
  %s6 = inlined_call_operand.vmem [shape: f32[8,1], index: 6, kind: input, shape index: {}]
  %s7 = inlined_call_operand.vmem [shape: f32[2,256], index: 7, kind: input, shape index: {}]
  %s8 = inlined_call_operand.hbm [shape: f32[2,8,256], index: 8, kind: output, shape index: {}]
  %s9 = sld [smem:[#allocation0]]
  $region65: #{tpu_custom_call.1} parent=0
    _
  %s11 = ssub.s32 1, %s9
  %s12 = scalar_select 0, %s11, %s9
  $region1: #{tpu_custom_call.1} parent=0
    #allocation4 [shape = 'u8[16384]{0}', space=vmem, size = 0x4000, scoped, tag = 'output window, operand 0']
    #allocation5 [shape = 's32[2]{0}', space=sflag, size = 0x8, scoped, tag = 'scoped memory for tpu_custom_call.1']
    %13 = vsyncpa [#allocation5], 0
    %s14 = scalar_lea.sflag [#allocation5], 1
    %15 = vsyncpa %s14, 0
    loop: start=0, step=1, limit=4
    $region2: #{tpu_custom_call.1} parent=1 // loop_pre_header
      _
    $region3: #{tpu_custom_call.1} parent=1 // loop_header
      %s17 = sphi 0, %s21
      %p18 = scmp.ge.s32.totalorder %s17, 4
      %s27 = sphi 0, %s29
      %s30 = sphi 0, %s27
      %s31 = sphi 0, %s30
      %s47 = sphi 0, %s31
      %s51 = sphi 0, %s51
      %s53 = sphi 0, %s51
      %s54 = sphi 0, %s53
      %s68 = sphi 0, %s54
      %s72 = sphi 0, %s72
      %s74 = sphi 0, %s72
      %s75 = sphi 0, %s74
      %s89 = sphi 0, %s75
      %s93 = sphi 0, %s93
      %s95 = sphi 0, %s93
      %s96 = sphi 0, %s95
      %s110 = sphi 0, %s96
      %s114 = sphi 0, %s114
      %s116 = sphi 0, %s114
      %s117 = sphi 0, %s116
      %s131 = sphi 0, %s117
      %s135 = sphi 0, %s135
      %s137 = sphi 0, %s135
      %s138 = sphi 0, %s137
      %s152 = sphi 0, %s138
      %s156 = sphi 0, %s156
      %s158 = sphi 0, %s156
      %s159 = sphi 0, %s158
      %s173 = sphi 0, %s159
      %s177 = sphi 0, %s177
      %s179 = sphi 0, %s177
      %s180 = sphi 0, %s179
      %s194 = sphi 0, %s180
      %s200 = sphi 0, %s202
      %s203 = sphi 0, %s200
      %s204 = sphi 0, %s203
      %s220 = sphi 0, %s204
    $region4: #{tpu_custom_call.1} parent=1 // loop_header_branch
      %20 = sbr.rel (%p18) target = $region8
    $region5: #{tpu_custom_call.1} parent=1 // loop_body
      %s22 = ssub.s32 %s17, 1
      %s23 = ssub.s32 %s17, 2
      %s24 = sadd.s32 %s17, 1
      %s25 = ssub.s32 %s17, %s24
      %p26 = scmp.eq.s32.totalorder %s25, 0
      %s28 = sadd.s32 %s27, 1
      %s29 = scalar_select %p26, %s27, %s28
      %p32 = pneg %p26
      %p33 = scmp.eq.s32.totalorder %s17, 1
      %p34 = por %p32, %p33
      %p35 = scmp.ne.s32.totalorder %s27, %s30
      %p36 = scmp.eq.s32.totalorder %s17, 0
      %p37 = por %p35, %p36
      %p38 = scmp.ne.s32.totalorder %s27, %s30
      %p39 = scmp.eq.s32.totalorder %s22, 1
      %p40 = por %p38, %p39
      %p41 = scmp.ne.s32.totalorder %s30, %s31
      %p42 = scmp.eq.s32.totalorder %s22, 0
      %p43 = por %p41, %p42
      %p44 = scmp.ne.s32.totalorder %s30, %s31
      %p45 = scmp.eq.s32.totalorder %s23, 1
      %p46 = por %p44, %p45
      %p48 = scmp.ne.s32.totalorder %s31, %s47
      %p49 = scmp.eq.s32.totalorder %s23, 0
      %p50 = por %p48, %p49
      %s52 = sadd.s32 %s51, 1
      %p55 = scmp.eq.s32.totalorder %s17, 1
      %p56 = scmp.ne.s32.totalorder %s51, %s53
      %p57 = scmp.eq.s32.totalorder %s17, 0
      %p58 = por %p56, %p57
      %p59 = scmp.ne.s32.totalorder %s51, %s53
      %p60 = scmp.eq.s32.totalorder %s22, 1
      %p61 = por %p59, %p60
      %p62 = scmp.ne.s32.totalorder %s53, %s54
      %p63 = scmp.eq.s32.totalorder %s22, 0
      %p64 = por %p62, %p63
      %p65 = scmp.ne.s32.totalorder %s53, %s54
      %p66 = scmp.eq.s32.totalorder %s23, 1
      %p67 = por %p65, %p66
      %p69 = scmp.ne.s32.totalorder %s54, %s68
      %p70 = scmp.eq.s32.totalorder %s23, 0
      %p71 = por %p69, %p70
      %s73 = sadd.s32 %s72, 1
      %p76 = scmp.eq.s32.totalorder %s17, 1
      %p77 = scmp.ne.s32.totalorder %s72, %s74
      %p78 = scmp.eq.s32.totalorder %s17, 0
      %p79 = por %p77, %p78
      %p80 = scmp.ne.s32.totalorder %s72, %s74
      %p81 = scmp.eq.s32.totalorder %s22, 1
      %p82 = por %p80, %p81
      %p83 = scmp.ne.s32.totalorder %s74, %s75
      %p84 = scmp.eq.s32.totalorder %s22, 0
      %p85 = por %p83, %p84
      %p86 = scmp.ne.s32.totalorder %s74, %s75
      %p87 = scmp.eq.s32.totalorder %s23, 1
      %p88 = por %p86, %p87
      %p90 = scmp.ne.s32.totalorder %s75, %s89
      %p91 = scmp.eq.s32.totalorder %s23, 0
      %p92 = por %p90, %p91
      %s94 = sadd.s32 %s93, 1
      %p97 = scmp.eq.s32.totalorder %s17, 1
      %p98 = scmp.ne.s32.totalorder %s93, %s95
      %p99 = scmp.eq.s32.totalorder %s17, 0
      %p100 = por %p98, %p99
      %p101 = scmp.ne.s32.totalorder %s93, %s95
      %p102 = scmp.eq.s32.totalorder %s22, 1
      %p103 = por %p101, %p102
      %p104 = scmp.ne.s32.totalorder %s95, %s96
      %p105 = scmp.eq.s32.totalorder %s22, 0
      %p106 = por %p104, %p105
      %p107 = scmp.ne.s32.totalorder %s95, %s96
      %p108 = scmp.eq.s32.totalorder %s23, 1
      %p109 = por %p107, %p108
      %p111 = scmp.ne.s32.totalorder %s96, %s110
      %p112 = scmp.eq.s32.totalorder %s23, 0
      %p113 = por %p111, %p112
      %s115 = sadd.s32 %s114, 1
      %p118 = scmp.eq.s32.totalorder %s17, 1
      %p119 = scmp.ne.s32.totalorder %s114, %s116
      %p120 = scmp.eq.s32.totalorder %s17, 0
      %p121 = por %p119, %p120
      %p122 = scmp.ne.s32.totalorder %s114, %s116
      %p123 = scmp.eq.s32.totalorder %s22, 1
      %p124 = por %p122, %p123
      %p125 = scmp.ne.s32.totalorder %s116, %s117
      %p126 = scmp.eq.s32.totalorder %s22, 0
      %p127 = por %p125, %p126
      %p128 = scmp.ne.s32.totalorder %s116, %s117
      %p129 = scmp.eq.s32.totalorder %s23, 1
      %p130 = por %p128, %p129
      %p132 = scmp.ne.s32.totalorder %s117, %s131
      %p133 = scmp.eq.s32.totalorder %s23, 0
      %p134 = por %p132, %p133
      %s136 = sadd.s32 %s135, 1
      %p139 = scmp.eq.s32.totalorder %s17, 1
      %p140 = scmp.ne.s32.totalorder %s135, %s137
      %p141 = scmp.eq.s32.totalorder %s17, 0
      %p142 = por %p140, %p141
      %p143 = scmp.ne.s32.totalorder %s135, %s137
      %p144 = scmp.eq.s32.totalorder %s22, 1
      %p145 = por %p143, %p144
      %p146 = scmp.ne.s32.totalorder %s137, %s138
      %p147 = scmp.eq.s32.totalorder %s22, 0
      %p148 = por %p146, %p147
      %p149 = scmp.ne.s32.totalorder %s137, %s138
      %p150 = scmp.eq.s32.totalorder %s23, 1
      %p151 = por %p149, %p150
      %p153 = scmp.ne.s32.totalorder %s138, %s152
      %p154 = scmp.eq.s32.totalorder %s23, 0
      %p155 = por %p153, %p154
      %s157 = sadd.s32 %s156, 1
      %p160 = scmp.eq.s32.totalorder %s17, 1
      %p161 = scmp.ne.s32.totalorder %s156, %s158
      %p162 = scmp.eq.s32.totalorder %s17, 0
      %p163 = por %p161, %p162
      %p164 = scmp.ne.s32.totalorder %s156, %s158
      %p165 = scmp.eq.s32.totalorder %s22, 1
      %p166 = por %p164, %p165
      %p167 = scmp.ne.s32.totalorder %s158, %s159
      %p168 = scmp.eq.s32.totalorder %s22, 0
      %p169 = por %p167, %p168
      %p170 = scmp.ne.s32.totalorder %s158, %s159
      %p171 = scmp.eq.s32.totalorder %s23, 1
      %p172 = por %p170, %p171
      %p174 = scmp.ne.s32.totalorder %s159, %s173
      %p175 = scmp.eq.s32.totalorder %s23, 0
      %p176 = por %p174, %p175
      %s178 = sadd.s32 %s177, 1
      %p181 = scmp.eq.s32.totalorder %s17, 1
      %p182 = scmp.ne.s32.totalorder %s177, %s179
      %p183 = scmp.eq.s32.totalorder %s17, 0
      %p184 = por %p182, %p183
      %p185 = scmp.ne.s32.totalorder %s177, %s179
      %p186 = scmp.eq.s32.totalorder %s22, 1
      %p187 = por %p185, %p186
      %p188 = scmp.ne.s32.totalorder %s179, %s180
      %p189 = scmp.eq.s32.totalorder %s22, 0
      %p190 = por %p188, %p189
      %p191 = scmp.ne.s32.totalorder %s179, %s180
      %p192 = scmp.eq.s32.totalorder %s23, 1
      %p193 = por %p191, %p192
      %p195 = scmp.ne.s32.totalorder %s180, %s194
      %p196 = scmp.eq.s32.totalorder %s23, 0
      %p197 = por %p195, %p196
      %s198 = ssub.s32 %s17, %s24
      %p199 = scmp.eq.s32.totalorder %s198, 0
      %s201 = sadd.s32 %s200, 1
      %s202 = scalar_select %p199, %s200, %s201
      %p205 = pneg %p199
      %p206 = scmp.eq.s32.totalorder %s17, 1
      %p207 = por %p205, %p206
      %p208 = scmp.ne.s32.totalorder %s200, %s203
      %p209 = scmp.eq.s32.totalorder %s17, 0
      %p210 = por %p208, %p209
      %p211 = scmp.ne.s32.totalorder %s200, %s203
      %p212 = scmp.eq.s32.totalorder %s22, 1
      %p213 = por %p211, %p212
      %p214 = scmp.ne.s32.totalorder %s203, %s204
      %p215 = scmp.eq.s32.totalorder %s22, 0
      %p216 = por %p214, %p215
      %p217 = scmp.ne.s32.totalorder %s203, %s204
      %p218 = scmp.eq.s32.totalorder %s23, 1
      %p219 = por %p217, %p218
      %p221 = scmp.ne.s32.totalorder %s204, %s220
      %p222 = scmp.eq.s32.totalorder %s23, 0
      %p223 = por %p221, %p222
      %p224 = scmp.le.s32.totalorder 1, %s17
      %p225 = scmp.lt.s32.totalorder %s17, 3
      %p226 = pnand %p224, %p225
      %p227 = pneg %p226
      // Predicated region
      $region9: #{tpu_custom_call.1} parent=5 // pred_check
        _
      $region10: #{tpu_custom_call.1} parent=5 // pred_check_branch
        %229 = sbr.rel (%p226) target = $region12
      $region11: #{tpu_custom_call.1} parent=5 // pred_region
        %s230 = ssub.s32 %s17, 1
        // Predicated region
        $region13: #{tpu_custom_call.1} parent=11 // pred_check
          %p231 = pneg %p64
        $region14: #{tpu_custom_call.1} parent=11 // pred_check_branch
          %233 = sbr.rel (%p231) target = $region16
        $region15: #{tpu_custom_call.1} parent=11 // pred_region
          _
        $region16: #{tpu_custom_call.1} parent=11 // pred_fallthru
          _
        // Predicated region
        $region17: #{tpu_custom_call.1} parent=11 // pred_check
          %p234 = pneg %p85
        $region18: #{tpu_custom_call.1} parent=11 // pred_check_branch
          %236 = sbr.rel (%p234) target = $region20
        $region19: #{tpu_custom_call.1} parent=11 // pred_region
          _
        $region20: #{tpu_custom_call.1} parent=11 // pred_fallthru
          _
        // Predicated region
        $region21: #{tpu_custom_call.1} parent=11 // pred_check
          %p237 = pneg %p106
        $region22: #{tpu_custom_call.1} parent=11 // pred_check_branch
          %239 = sbr.rel (%p237) target = $region24
        $region23: #{tpu_custom_call.1} parent=11 // pred_region
          _
        $region24: #{tpu_custom_call.1} parent=11 // pred_fallthru
          _
        // Predicated region
        $region25: #{tpu_custom_call.1} parent=11 // pred_check
          %p240 = pneg %p127
        $region26: #{tpu_custom_call.1} parent=11 // pred_check_branch
          %242 = sbr.rel (%p240) target = $region28
        $region27: #{tpu_custom_call.1} parent=11 // pred_region
          _
        $region28: #{tpu_custom_call.1} parent=11 // pred_fallthru
          _
        // Predicated region
        $region29: #{tpu_custom_call.1} parent=11 // pred_check
          %p243 = pneg %p148
        $region30: #{tpu_custom_call.1} parent=11 // pred_check_branch
          %245 = sbr.rel (%p243) target = $region32
        $region31: #{tpu_custom_call.1} parent=11 // pred_region
          _
        $region32: #{tpu_custom_call.1} parent=11 // pred_fallthru
          _
        // Predicated region
        $region33: #{tpu_custom_call.1} parent=11 // pred_check
          %p246 = pneg %p169
        $region34: #{tpu_custom_call.1} parent=11 // pred_check_branch
          %248 = sbr.rel (%p246) target = $region36
        $region35: #{tpu_custom_call.1} parent=11 // pred_region
          _
        $region36: #{tpu_custom_call.1} parent=11 // pred_fallthru
          _
        // Predicated region
        $region37: #{tpu_custom_call.1} parent=11 // pred_check
          %p249 = pneg %p190
        $region38: #{tpu_custom_call.1} parent=11 // pred_check_branch
          %251 = sbr.rel (%p249) target = $region40
        $region39: #{tpu_custom_call.1} parent=11 // pred_region
          _
        $region40: #{tpu_custom_call.1} parent=11 // pred_fallthru
          _
      $region12: #{tpu_custom_call.1} parent=5 // pred_fallthru
        _
      %p252 = scmp.lt.s32.totalorder %s17, 2
      // Predicated region
      $region41: #{tpu_custom_call.1} parent=5 // pred_check
        %p253 = pneg %p252
      $region42: #{tpu_custom_call.1} parent=5 // pred_check_branch
        %255 = sbr.rel (%p253) target = $region44
      $region43: #{tpu_custom_call.1} parent=5 // pred_region
        // Predicated region
        $region45: #{tpu_custom_call.1} parent=43 // pred_check
          %p256 = pneg %p37
        $region46: #{tpu_custom_call.1} parent=43 // pred_check_branch
          %258 = sbr.rel (%p256) target = $region48
        $region47: #{tpu_custom_call.1} parent=43 // pred_region
          %p259 = scmp.lt.s32.totalorder %s17, 1
          %s260 = scalar_select %p259, %s17, 1
          %s261 = smul.addr %s260, 2
          %s262 = smul.addr %s261, 8
          %s263 = scalar_lea.vmem %s0, %s262
        $region48: #{tpu_custom_call.1} parent=43 // pred_fallthru
          _
      $region44: #{tpu_custom_call.1} parent=5 // pred_fallthru
        _
      %p264 = scmp.le.s32.totalorder 1, %s17
      %p265 = scmp.lt.s32.totalorder %s17, 3
      %p266 = pnand %p264, %p265
      %p267 = pneg %p266
      // Predicated region
      $region49: #{tpu_custom_call.1} parent=5 // pred_check
        _
      $region50: #{tpu_custom_call.1} parent=5 // pred_check_branch
        %269 = sbr.rel (%p266) target = $region52
      $region51: #{tpu_custom_call.1} parent=5 // pred_region
        %s270 = ssub.s32 %s17, 1
        %p271 = scmp.lt.s32.totalorder %s22, 1
        %s272 = scalar_select %p271, %s22, 1
        %s273 = smul.addr %s272, 2
        %s274 = smul.addr %s273, 8
        %s275 = scalar_lea.vmem %s0, %s274
        %p276 = pneg %p43
        %p277 = pneg %p40
        %p278 = pneg %p64
        %p279 = pneg %p61
        %p280 = pneg %p85
        %p281 = pneg %p82
        %p282 = pneg %p106
        %p283 = pneg %p103
        %p284 = pneg %p127
        %p285 = pneg %p124
        %p286 = pneg %p148
        %p287 = pneg %p145
        %p288 = pneg %p169
        %p289 = pneg %p166
        %p290 = pneg %p190
        %p291 = pneg %p187
        %p292 = pneg %p216
        %p293 = pneg %p213
        %s294 = sand.u32 %s203, 1
        %s295 = scalar_lea.sflag [#allocation5], %s294
        %s296 = sand.u32 %s203, 1
        %s297 = smul.addr %s296, 16
        %s298 = scalar_lea.vmem [#allocation4], %s297
        %p299 = scmp.lt.s32.totalorder %s22, 1
        %s300 = scalar_select %p299, %s22, 1
        %s301 = smul.addr %s300, 2
        %s302 = smul.addr %s301, 8
        %s303 = scalar_lea.vmem %s0, %s302
        %v304 = vld [vmem:[%s303] sm:$0xff]
        %v305 = vld [vmem:[%s303 + $0x8] sm:$0xff]
        %v306 = vld [vmem:[%s1] sm:$0xff]
        %v307 = vld [vmem:[%s1 + $0x8] sm:$0xf]
        %v308 = vld [vmem:[%s2] sm:$0xff]
        %v309 = vld [vmem:[%s2 + $0x8] sm:$0xf]
        %311 = vset.pattern.permute.xlu0 0
        %312 = vperm.xlu0 %311, %v308
        %v313 = vpop.permute.xlu0 %312
        %316 = vset.pattern.permute.xlu0 0
        %317 = vperm.xlu0 %316, %v309
        %v318 = vpop.permute.xlu0 %317
        %vm320 = vcmask 64512
        %v322 = vsel %vm320, %v306, 0
        %v325 = vsel %vm320, %v307, 0
        %327 = vmatprep.subr.mxu0 %v305
        %328 = vmatpush1.msra.mxu0 %v304
        %329 = vmatprep.subr.mxu0 0.0
        %330 = vmatpush1.msra.mxu0 0.0
        %331 = vmatprep.subr.mxu0 0.0
        %332 = vmatpush1.msra.mxu0 0.0
        %333 = vmatprep.subr.mxu0 0.0
        %334 = vmatpush1.msra.mxu0 0.0
        %335 = vmatprep.subr.mxu0 0.0
        %336 = vmatpush1.msra.mxu0 0.0
        %337 = vmatprep.subr.mxu0 0.0
        %338 = vmatpush1.msra.mxu0 0.0
        %339 = vmatprep.subr.mxu0 0.0
        %340 = vmatpush1.msra.mxu0 0.0
        %341 = vmatprep.subr.mxu0 0.0
        %342 = vmatpush1.msra.mxu0 0.0
        %343 = vmatprep.subr.mxu0 0.0
        %344 = vmatpush1.msra.mxu0 0.0
        %345 = vmatprep.subr.mxu0 0.0
        %346 = vmatpush1.msra.mxu0 0.0
        %347 = vmatprep.subr.mxu0 0.0
        %348 = vmatpush1.msra.mxu0 0.0
        %349 = vmatprep.subr.mxu0 0.0
        %350 = vmatpush1.msra.mxu0 0.0
        %351 = vmatprep.subr.mxu0 0.0
        %352 = vmatpush1.msra.mxu0 0.0
        %353 = vmatprep.subr.mxu0 0.0
        %354 = vmatpush1.msra.mxu0 0.0
        %355 = vmatprep.subr.mxu0 0.0
        %356 = vmatpush1.msra.mxu0 0.0
        %357 = vmatprep.subr.mxu0 0.0
        %358 = vmatpush1.msra.mxu0 0.0
        %359 = vmatprep.subr.mxu0 0.0
        %360 = vmatpush1.msra.mxu0 0.0
        %361 = vmatprep.subr.mxu0 0.0
        %362 = vmatpush1.msra.mxu0 0.0
        %363 = vmatprep.subr.mxu0 0.0
        %364 = vmatpush1.msra.mxu0 0.0
        %365 = vmatprep.subr.mxu0 0.0
        %366 = vmatpush1.msra.mxu0 0.0
        %367 = vmatprep.subr.mxu0 0.0
        %368 = vmatpush1.msra.mxu0 0.0
        %369 = vmatprep.subr.mxu0 0.0
        %370 = vmatpush1.msra.mxu0 0.0
        %371 = vmatprep.subr.mxu0 0.0
        %372 = vmatpush1.msra.mxu0 0.0
        %373 = vmatprep.subr.mxu0 0.0
        %374 = vmatpush1.msra.mxu0 0.0
        %375 = vmatprep.subr.mxu0 0.0
        %376 = vmatpush1.msra.mxu0 0.0
        %377 = vmatprep.subr.mxu0 0.0
        %378 = vmatpush1.msra.mxu0 0.0
        %379 = vmatprep.subr.mxu0 0.0
        %380 = vmatpush1.msra.mxu0 0.0
        %381 = vmatprep.subr.mxu0 0.0
        %382 = vmatpush1.msra.mxu0 0.0
        %383 = vmatprep.subr.mxu0 0.0
        %384 = vmatpush1.msra.mxu0 0.0
        %385 = vmatprep.subr.mxu0 0.0
        %386 = vmatpush1.msra.mxu0 0.0
        %387 = vmatprep.subr.mxu0 0.0
        %388 = vmatpush1.msra.mxu0 0.0
        %389 = vmatprep.subr.mxu0 0.0
        %390 = vmatpush1.msra.mxu0 0.0
        %391 = vmatprep.mubr.f32.mxu0 0.0
        %392 = vmatmul.mubr.f32.gmra.mrb[0].mxu0 %v322
        %v393 = vpop.f32.mrb[0].mxu0
        %v394 = vadd.f32 %v313, %v393
        %v395 = vpop.f32.mrb[0].mxu0
        %v396 = vadd.f32 %v313, %v395
        %397 = vmatprep.mubr.f32.mxu0 0.0
        %398 = vmatmul.mubr.f32.gmra.mrb[0].mxu0 %v325
        %v399 = vpop.f32.mrb[0].mxu0
        %v400 = vadd.f32 %v318, %v399
        %v401 = vpop.f32.mrb[0].mxu0
        %v402 = vadd.f32 %v318, %v401
        %403 = vdwg.mxu0
        %vm404 = vcmp.ge.f32.partialorder %v400, 0.0
        %vm405 = vcmp.ge.f32.partialorder %v402, 0.0
        %v406 = vmul.f32 %v400, 0.2
        %v407 = vmul.f32 %v402, 0.2
        %v408 = vsel %vm404, %v400, %v406
        %v409 = vsel %vm405, %v402, %v407
        %v410 = vmul.f32 %v408, 1.4142135
        %v411 = vmul.f32 %v409, 1.4142135
        %vm412 = vcmask 134144
        %413 = vst.msk [vmem:[#allocation2] sm:$0xf] %vm412, 0.0
        %v416 = vcombine.low %v410, %v411
        %417 = vrot.lane.b32.xlu0 %v416, 17
        %v418 = vpop.permute.xlu0 %417
        %v419 = vrot.slane %v418, 4
        %vm420 = vcmask 138240
        %v421 = vsel %vm420, %v419, %v418
        %vm424 = vcmask 1043592
        %vm425 = vcmask 1047556
        %vm426 = vmor %vm425, %vm424
        %427 = vst.msk [vmem:[#allocation2] sm:$0xff] %vm426, %v421
        %428 = vst.msk [vmem:[#allocation2 + $0x8] sm:$0xf] %vm412, %v419
        %vm429 = vcmask 273544
        %430 = vst.msk [vmem:[#allocation2 + $0x8] sm:$0xf] %vm429, 0.0
        %v431 = vld [vmem:[%s7] ss:$2 sm:$0x3]
        %s432 = scalar_lea.vmem %s7, 1
        %v433 = vld [vmem:[%s432] ss:$2 sm:$0x3]
        %v434 = vld [vmem:[#allocation2] sm:$0xff]
        %v436 = vlaneseq
        %v437 = vshrl.u32 %v436, 7
        %v438 = vsub.s32 0, %v437
        %v439 = vrot.slane %v431, %v438
        %v440 = vlaneseq
        %v441 = vshrl.u32 %v440, 7
        %v442 = vsub.s32 1, %v441
        %v443 = vrot.slane %v431, %v442
        %v444 = vcombine.low %v439, %v443
        %v446 = vmul.f32 %v434, %v444
        %v448 = vcombine.high %v446, %v446
        %450 = vst [vmem:[#allocation3] sm:$0xf] %v446
        %451 = vst [vmem:[#allocation3 + $0x8] sm:$0xf] %v448
        %v452 = vld [vmem:[#allocation2] sm:$0xff]
        %v453 = vld [vmem:[#allocation2 + $0x8] sm:$0xf]
        %v456 = vcombine.low %v452, %v452
        %v457 = vcombine.low %v453, %v453
        %458 = vrot.lane.b32.xlu0 %v456, 127
        %v459 = vpop.permute.xlu0 %458
        %460 = vrot.lane.b32.xlu0 %v452, 127
        %v461 = vpop.permute.xlu0 %460
        %462 = vrot.lane.b32.xlu0 %v457, 127
        %v463 = vpop.permute.xlu0 %462
        %vm464 = vcmask 1039360
        %v465 = vsel %vm464, %v459, %v461
        %v466 = vsel %vm464, %v461, %v463
        %469 = vst [vmem:[#allocation3] sm:$0xf0] %v465
        %470 = vst [vmem:[#allocation3 + $0x8] sm:$0xf0] %v466
        %v471 = vld [vmem:[#allocation2] sm:$0xff]
        %v472 = vld [vmem:[#allocation2 + $0x8] sm:$0xf]
        %v474 = vlaneseq
        %v475 = vshrl.u32 %v474, 7
        %v476 = vsub.s32 0, %v475
        %v477 = vrot.slane %v433, %v476
        %v478 = vlaneseq
        %v479 = vshrl.u32 %v478, 7
        %v480 = vsub.s32 1, %v479
        %v481 = vrot.slane %v433, %v480
        %v482 = vcombine.low %v477, %v481
        %483 = vrot.lane.b32.xlu0 %v482, 2
        %v484 = vpop.permute.xlu0 %483
        %v485 = vrot.slane %v484, 4
        %vm486 = vcmask 15360
        %v487 = vsel %vm486, %v485, %v484
        %v490 = vmul.f32 %v471, %v487
        %v491 = vmul.f32 %v472, %v485
        %v494 = vcombine.high %v490, %v490
        %495 = vrot.lane.b32.xlu0 %v490, 126
        %v496 = vpop.permute.xlu0 %495
        %497 = vrot.lane.b32.xlu0 %v494, 126
        %v498 = vpop.permute.xlu0 %497
        %499 = vrot.lane.b32.xlu0 %v491, 126
        %v500 = vpop.permute.xlu0 %499
        %vm501 = vcmask 1031168
        %v502 = vsel %vm501, %v496, %v498
        %v503 = vsel %vm501, %v498, %v500
        %506 = vst [vmem:[#allocation3 + $0x10] sm:$0xf] %v502
        %507 = vst [vmem:[#allocation3 + $0x18] sm:$0xf] %v503
        %v508 = vld [vmem:[#allocation2] sm:$0xff]
        %v509 = vld [vmem:[#allocation2 + $0x8] sm:$0xf]
        %510 = vrot.lane.b32.xlu0 %v444, 16
        %v511 = vpop.permute.xlu0 %510
        %v512 = vrot.slane %v511, 4
        %vm513 = vcmask 130048
        %v514 = vsel %vm513, %v512, %v511
        %v517 = vmul.f32 %v508, %v514
        %v518 = vmul.f32 %v509, %v512
        %v521 = vcombine.low %v517, %v517
        %v522 = vcombine.low %v518, %v518
        %523 = vrot.lane.b32.xlu0 %v521, 112
        %v524 = vpop.permute.xlu0 %523
        %525 = vrot.lane.b32.xlu0 %v517, 112
        %v526 = vpop.permute.xlu0 %525
        %527 = vrot.lane.b32.xlu0 %v522, 112
        %v528 = vpop.permute.xlu0 %527
        %vm529 = vcmask 916480
        %v530 = vsel %vm529, %v524, %v526
        %v531 = vsel %vm529, %v526, %v528
        %534 = vst [vmem:[#allocation3 + $0x10] sm:$0xf0] %v530
        %535 = vst [vmem:[#allocation3 + $0x18] sm:$0xf0] %v531
        %v536 = vld [vmem:[#allocation2] sm:$0xff]
        %v537 = vld [vmem:[#allocation2 + $0x8] sm:$0xf]
        %v540 = vcombine.high %v536, %v536
        %541 = vrot.lane.b32.xlu0 %v536, 111
        %v542 = vpop.permute.xlu0 %541
        %543 = vrot.lane.b32.xlu0 %v540, 111
        %v544 = vpop.permute.xlu0 %543
        %545 = vrot.lane.b32.xlu0 %v537, 111
        %v546 = vpop.permute.xlu0 %545
        %vm547 = vcmask 908288
        %v548 = vsel %vm547, %v542, %v544
        %v549 = vsel %vm547, %v544, %v546
        %552 = vst [vmem:[#allocation3 + $0x20] sm:$0xf] %v548
        %553 = vst [vmem:[#allocation3 + $0x28] sm:$0xf] %v549
        %v554 = vld [vmem:[#allocation2] sm:$0xff]
        %v555 = vld [vmem:[#allocation2 + $0x8] sm:$0xf]
        %556 = vrot.lane.b32.xlu0 %v482, 18
        %v557 = vpop.permute.xlu0 %556
        %v558 = vrot.slane %v557, 4
        %vm559 = vcmask 146432
        %v560 = vsel %vm559, %v558, %v557
        %v563 = vmul.f32 %v554, %v560
        %v564 = vmul.f32 %v555, %v558
        %v567 = vcombine.low %v563, %v563
        %v568 = vcombine.low %v564, %v564
        %569 = vrot.lane.b32.xlu0 %v567, 110
        %v570 = vpop.permute.xlu0 %569
        %571 = vrot.lane.b32.xlu0 %v563, 110
        %v572 = vpop.permute.xlu0 %571
        %573 = vrot.lane.b32.xlu0 %v568, 110
        %v574 = vpop.permute.xlu0 %573
        %vm575 = vcmask 900096
        %v576 = vsel %vm575, %v570, %v572
        %v577 = vsel %vm575, %v572, %v574
        %580 = vst [vmem:[#allocation3 + $0x20] sm:$0xf0] %v576
        %581 = vst [vmem:[#allocation3 + $0x28] sm:$0xf0] %v577
        %v582 = vld [vmem:[#allocation2] sm:$0xff]
        %v583 = vld [vmem:[#allocation2 + $0x8] sm:$0xf]
        %584 = vrot.lane.b32.xlu0 %v444, 32
        %v585 = vpop.permute.xlu0 %584
        %v586 = vrot.slane %v585, 4
        %vm587 = vcmask 261120
        %v588 = vsel %vm587, %v586, %v585
        %v591 = vmul.f32 %v582, %v588
        %v592 = vmul.f32 %v583, %v586
        %v595 = vcombine.high %v591, %v591
        %596 = vrot.lane.b32.xlu0 %v591, 96
        %v597 = vpop.permute.xlu0 %596
        %598 = vrot.lane.b32.xlu0 %v595, 96
        %v599 = vpop.permute.xlu0 %598
        %600 = vrot.lane.b32.xlu0 %v592, 96
        %v601 = vpop.permute.xlu0 %600
        %vm602 = vcmask 785408
        %v603 = vsel %vm602, %v597, %v599
        %v604 = vsel %vm602, %v599, %v601
        %607 = vst [vmem:[#allocation3 + $0x30] sm:$0xf] %v603
        %608 = vst [vmem:[#allocation3 + $0x38] sm:$0xf] %v604
        %v609 = vld [vmem:[#allocation2] sm:$0xff]
        %v610 = vld [vmem:[#allocation2 + $0x8] sm:$0xf]
        %v613 = vcombine.low %v609, %v609
        %v614 = vcombine.low %v610, %v610
        %615 = vrot.lane.b32.xlu0 %v613, 95
        %v616 = vpop.permute.xlu0 %615
        %617 = vrot.lane.b32.xlu0 %v609, 95
        %v618 = vpop.permute.xlu0 %617
        %619 = vrot.lane.b32.xlu0 %v614, 95
        %v620 = vpop.permute.xlu0 %619
        %vm621 = vcmask 777216
        %v622 = vsel %vm621, %v616, %v618
        %v623 = vsel %vm621, %v618, %v620
        %626 = vst [vmem:[#allocation3 + $0x30] sm:$0xf0] %v622
        %627 = vst [vmem:[#allocation3 + $0x38] sm:$0xf0] %v623
        %v628 = vld [vmem:[#allocation2] sm:$0xff]
        %v629 = vld [vmem:[#allocation2 + $0x8] sm:$0xf]
        %630 = vrot.lane.b32.xlu0 %v482, 34
        %v631 = vpop.permute.xlu0 %630
        %v632 = vrot.slane %v631, 4
        %vm633 = vcmask 277504
        %v634 = vsel %vm633, %v632, %v631
        %v637 = vmul.f32 %v628, %v634
        %v638 = vmul.f32 %v629, %v632
        %v641 = vcombine.high %v637, %v637
        %642 = vrot.lane.b32.xlu0 %v637, 94
        %v643 = vpop.permute.xlu0 %642
        %644 = vrot.lane.b32.xlu0 %v641, 94
        %v645 = vpop.permute.xlu0 %644
        %646 = vrot.lane.b32.xlu0 %v638, 94
        %v647 = vpop.permute.xlu0 %646
        %vm648 = vcmask 769024
        %v649 = vsel %vm648, %v643, %v645
        %v650 = vsel %vm648, %v645, %v647
        %653 = vst [vmem:[#allocation3 + $0x40] sm:$0xf] %v649
        %654 = vst [vmem:[#allocation3 + $0x48] sm:$0xf] %v650
        %v655 = vld [vmem:[%s3] sm:$0xf]
        %v656 = vld [vmem:[#allocation3] sm:$0xff]
        %v657 = vld [vmem:[#allocation3 + $0x8] sm:$0xff]
        %v658 = vld [vmem:[#allocation3 + $0x10] sm:$0xff]
        %v659 = vld [vmem:[#allocation3 + $0x18] sm:$0xff]
        %v660 = vld [vmem:[#allocation3 + $0x20] sm:$0xff]
        %v661 = vld [vmem:[#allocation3 + $0x28] sm:$0xff]
        %v662 = vld [vmem:[#allocation3 + $0x30] sm:$0xff]
        %v663 = vld [vmem:[#allocation3 + $0x38] sm:$0xff]
        %v664 = vld [vmem:[#allocation3 + $0x40] sm:$0xf]
        %v665 = vld [vmem:[#allocation3 + $0x48] sm:$0xf]
        %v666 = vld [vmem:[%s4] sm:$0xf]
        %668 = vset.pattern.permute.xlu0 0
        %669 = vperm.xlu0 %668, %v666
        %v670 = vpop.permute.xlu0 %669
        %vm672 = vcmask 293888
        %v674 = vsel %vm672, %v655, 0
        %vm676 = vcmask 1043456
        %v678 = vsel %vm676, %v664, 0
        %v681 = vsel %vm676, %v665, 0
        %683 = vmatprep.subr.mxu0 %v657
        %684 = vmatpush1.msra.mxu0 %v656
        %685 = vmatprep.subr.mxu0 %v659
        %686 = vmatpush1.msra.mxu0 %v658
        %687 = vmatprep.subr.mxu0 %v661
        %688 = vmatpush1.msra.mxu0 %v660
        %689 = vmatprep.subr.mxu0 %v663
        %690 = vmatpush1.msra.mxu0 %v662
        %691 = vmatprep.subr.mxu0 %v681
        %692 = vmatpush1.msra.mxu0 %v678
        %693 = vmatprep.subr.mxu0 0.0
        %694 = vmatpush1.msra.mxu0 0.0
        %695 = vmatprep.subr.mxu0 0.0
        %696 = vmatpush1.msra.mxu0 0.0
        %697 = vmatprep.subr.mxu0 0.0
        %698 = vmatpush1.msra.mxu0 0.0
        %699 = vmatprep.subr.mxu0 0.0
        %700 = vmatpush1.msra.mxu0 0.0
        %701 = vmatprep.subr.mxu0 0.0
        %702 = vmatpush1.msra.mxu0 0.0
        %703 = vmatprep.subr.mxu0 0.0
        %704 = vmatpush1.msra.mxu0 0.0
        %705 = vmatprep.subr.mxu0 0.0
        %706 = vmatpush1.msra.mxu0 0.0
        %707 = vmatprep.subr.mxu0 0.0
        %708 = vmatpush1.msra.mxu0 0.0
        %709 = vmatprep.subr.mxu0 0.0
        %710 = vmatpush1.msra.mxu0 0.0
        %711 = vmatprep.subr.mxu0 0.0
        %712 = vmatpush1.msra.mxu0 0.0
        %713 = vmatprep.subr.mxu0 0.0
        %714 = vmatpush1.msra.mxu0 0.0
        %715 = vmatprep.subr.mxu0 0.0
        %716 = vmatpush1.msra.mxu0 0.0
        %717 = vmatprep.subr.mxu0 0.0
        %718 = vmatpush1.msra.mxu0 0.0
        %719 = vmatprep.subr.mxu0 0.0
        %720 = vmatpush1.msra.mxu0 0.0
        %721 = vmatprep.subr.mxu0 0.0
        %722 = vmatpush1.msra.mxu0 0.0
        %723 = vmatprep.subr.mxu0 0.0
        %724 = vmatpush1.msra.mxu0 0.0
        %725 = vmatprep.subr.mxu0 0.0
        %726 = vmatpush1.msra.mxu0 0.0
        %727 = vmatprep.subr.mxu0 0.0
        %728 = vmatpush1.msra.mxu0 0.0
        %729 = vmatprep.subr.mxu0 0.0
        %730 = vmatpush1.msra.mxu0 0.0
        %731 = vmatprep.subr.mxu0 0.0
        %732 = vmatpush1.msra.mxu0 0.0
        %733 = vmatprep.subr.mxu0 0.0
        %734 = vmatpush1.msra.mxu0 0.0
        %735 = vmatprep.subr.mxu0 0.0
        %736 = vmatpush1.msra.mxu0 0.0
        %737 = vmatprep.subr.mxu0 0.0
        %738 = vmatpush1.msra.mxu0 0.0
        %739 = vmatprep.subr.mxu0 0.0
        %740 = vmatpush1.msra.mxu0 0.0
        %741 = vmatprep.subr.mxu0 0.0
        %742 = vmatpush1.msra.mxu0 0.0
        %743 = vmatprep.subr.mxu0 0.0
        %744 = vmatpush1.msra.mxu0 0.0
        %745 = vmatprep.subr.mxu0 0.0
        %746 = vmatpush1.msra.mxu0 0.0
        %747 = vmatprep.mubr.f32.mxu0 0.0
        %748 = vmatmul.mubr.f32.gmra.mrb[0].mxu0 %v674
        %v749 = vpop.f32.mrb[0].mxu0
        %v750 = vadd.f32 %v670, %v749
        %v751 = vpop.f32.mrb[0].mxu0
        %v752 = vadd.f32 %v670, %v751
        %753 = vdwg.mxu0
        %vm754 = vcmp.ge.f32.partialorder %v750, 0.0
        %vm755 = vcmp.ge.f32.partialorder %v752, 0.0
        %v756 = vmul.f32 %v750, 0.2
        %v757 = vmul.f32 %v752, 0.2
        %v758 = vsel %vm754, %v750, %v756
        %v759 = vsel %vm755, %v752, %v757
        %v760 = vmul.f32 %v758, 1.4142135
        %v761 = vmul.f32 %v759, 1.4142135
        %v762 = vld [vmem:[%s5] sm:$0xff]
        %v763 = vld [vmem:[%s6] sm:$0xff]
        %765 = vset.pattern.permute.xlu0 0
        %766 = vperm.xlu0 %765, %v763
        %v767 = vpop.permute.xlu0 %766
        %vm769 = vcmask 31744
        %v771 = vsel %vm769, %v762, 0
        %v774 = vsel %vm676, %v760, 0
        %v777 = vsel %vm676, %v761, 0
        %779 = vmatprep.subr.mxu0 %v777
        %780 = vmatpush1.msra.mxu0 %v774
        %781 = vmatprep.subr.mxu0 0.0
        %782 = vmatpush1.msra.mxu0 0.0
        %783 = vmatprep.subr.mxu0 0.0
        %784 = vmatpush1.msra.mxu0 0.0
        %785 = vmatprep.subr.mxu0 0.0
        %786 = vmatpush1.msra.mxu0 0.0
        %787 = vmatprep.subr.mxu0 0.0
        %788 = vmatpush1.msra.mxu0 0.0
        %789 = vmatprep.subr.mxu0 0.0
        %790 = vmatpush1.msra.mxu0 0.0
        %791 = vmatprep.subr.mxu0 0.0
        %792 = vmatpush1.msra.mxu0 0.0
        %793 = vmatprep.subr.mxu0 0.0
        %794 = vmatpush1.msra.mxu0 0.0
        %795 = vmatprep.subr.mxu0 0.0
        %796 = vmatpush1.msra.mxu0 0.0
        %797 = vmatprep.subr.mxu0 0.0
        %798 = vmatpush1.msra.mxu0 0.0
        %799 = vmatprep.subr.mxu0 0.0
        %800 = vmatpush1.msra.mxu0 0.0
        %801 = vmatprep.subr.mxu0 0.0
        %802 = vmatpush1.msra.mxu0 0.0
        %803 = vmatprep.subr.mxu0 0.0
        %804 = vmatpush1.msra.mxu0 0.0
        %805 = vmatprep.subr.mxu0 0.0
        %806 = vmatpush1.msra.mxu0 0.0
        %807 = vmatprep.subr.mxu0 0.0
        %808 = vmatpush1.msra.mxu0 0.0
        %809 = vmatprep.subr.mxu0 0.0
        %810 = vmatpush1.msra.mxu0 0.0
        %811 = vmatprep.subr.mxu0 0.0
        %812 = vmatpush1.msra.mxu0 0.0
        %813 = vmatprep.subr.mxu0 0.0
        %814 = vmatpush1.msra.mxu0 0.0
        %815 = vmatprep.subr.mxu0 0.0
        %816 = vmatpush1.msra.mxu0 0.0
        %817 = vmatprep.subr.mxu0 0.0
        %818 = vmatpush1.msra.mxu0 0.0
        %819 = vmatprep.subr.mxu0 0.0
        %820 = vmatpush1.msra.mxu0 0.0
        %821 = vmatprep.subr.mxu0 0.0
        %822 = vmatpush1.msra.mxu0 0.0
        %823 = vmatprep.subr.mxu0 0.0
        %824 = vmatpush1.msra.mxu0 0.0
        %825 = vmatprep.subr.mxu0 0.0
        %826 = vmatpush1.msra.mxu0 0.0
        %827 = vmatprep.subr.mxu0 0.0
        %828 = vmatpush1.msra.mxu0 0.0
        %829 = vmatprep.subr.mxu0 0.0
        %830 = vmatpush1.msra.mxu0 0.0
        %831 = vmatprep.subr.mxu0 0.0
        %832 = vmatpush1.msra.mxu0 0.0
        %833 = vmatprep.subr.mxu0 0.0
        %834 = vmatpush1.msra.mxu0 0.0
        %835 = vmatprep.subr.mxu0 0.0
        %836 = vmatpush1.msra.mxu0 0.0
        %837 = vmatprep.subr.mxu0 0.0
        %838 = vmatpush1.msra.mxu0 0.0
        %839 = vmatprep.subr.mxu0 0.0
        %840 = vmatpush1.msra.mxu0 0.0
        %841 = vmatprep.subr.mxu0 0.0
        %842 = vmatpush1.msra.mxu0 0.0
        %843 = vmatprep.mubr.f32.mxu0 0.0
        %844 = vmatmul.mubr.f32.gmra.mrb[0].mxu0 %v771
        %v845 = vpop.f32.mrb[0].mxu0
        %v846 = vadd.f32 %v767, %v845
        %v847 = vpop.f32.mrb[0].mxu0
        %v848 = vadd.f32 %v767, %v847
        %849 = vdwg.mxu0
        %v850 = vadd.f32 %v846, %v394
        %v851 = vadd.f32 %v848, %v396
        %vm852 = vcmp.ge.f32.partialorder %v850, 0.0
        %vm853 = vcmp.ge.f32.partialorder %v851, 0.0
        %v854 = vmul.f32 %v850, 0.2
        %v855 = vmul.f32 %v851, 0.2
        %v856 = vsel %vm852, %v850, %v854
        %v857 = vsel %vm853, %v851, %v855
        %v858 = vmul.f32 %v856, 1.4142135
        %v859 = vmul.f32 %v857, 1.4142135
        %860 = vst [vmem:[%s298] sm:$0xff] %v858
        %861 = vst [vmem:[%s298 + $0x8] sm:$0xff] %v859
        %s862 = sand.u32 %s203, 1
        %s863 = scalar_lea.sflag [#allocation5], %s862
        %s864 = sand.u32 %s203, 1
        %s865 = smul.addr %s864, 16
        %s866 = scalar_lea.vmem [#allocation4], %s865
        // Predicated region
        $region53: #{tpu_custom_call.1} parent=51 // pred_check
          %p867 = pneg %p213
        $region54: #{tpu_custom_call.1} parent=51 // pred_check_branch
          %869 = sbr.rel (%p867) target = $region56
        $region55: #{tpu_custom_call.1} parent=51 // pred_region
          %s871 = ssub.s32 256, 256
          %872 = vsyncadd %s863, %s871
          %s873 = smul.addr %s22, 2
          %s874 = smul.addr %s873, 128
          %s875 = scalar_lea.hbm %s8, %s874
          %s877 = sshll.u32 %s866, 4
          %s878 = int_to_ptr.vmem [resolvable:$true] %s877
          %880 = dma.vmem_to_hbm [thread:$0]  %s878, 256, %s875, %s863
        $region56: #{tpu_custom_call.1} parent=51 // pred_fallthru
          _
      $region52: #{tpu_custom_call.1} parent=5 // pred_fallthru
        _
      %p881 = scmp.le.s32.totalorder 2, %s17
      // Predicated region
      $region57: #{tpu_custom_call.1} parent=5 // pred_check
        %p882 = pneg %p881
      $region58: #{tpu_custom_call.1} parent=5 // pred_check_branch
        %884 = sbr.rel (%p882) target = $region60
      $region59: #{tpu_custom_call.1} parent=5 // pred_region
        %s885 = ssub.s32 %s17, 2
        // Predicated region
        $region61: #{tpu_custom_call.1} parent=59 // pred_check
          %p886 = pneg %p219
        $region62: #{tpu_custom_call.1} parent=59 // pred_check_branch
          %888 = sbr.rel (%p886) target = $region64
        $region63: #{tpu_custom_call.1} parent=59 // pred_region
          %s889 = sand.u32 %s204, 1
          %s890 = scalar_lea.sflag [#allocation5], %s889
          %s891 = sand.u32 %s204, 1
          %s892 = smul.addr %s891, 16
          %s893 = scalar_lea.vmem [#allocation4], %s892
          %894 = dma.done %s890, 256
        $region64: #{tpu_custom_call.1} parent=59 // pred_fallthru
          _
      $region60: #{tpu_custom_call.1} parent=5 // pred_fallthru
        _
    $region6: #{tpu_custom_call.1} parent=1 // loop_footer
      %s21 = sadd.s32 1, %s17
    $region7: #{tpu_custom_call.1} parent=1 // loop_footer_branch
      %16 = sbr.rel target = $region3
    $region8: #{tpu_custom_call.1} parent=1 // loop_exit
      _
    %895 = vsyncpa [#allocation5], 1
    %s896 = scalar_lea.sflag [#allocation5], 1
    %897 = vsyncpa %s896, 1

</llo_original>
